<compile_context>
chip_gen: v7x
topology: tpu7x:2x2x1
jax: 0.10.0
libtpu: 0.0.40
codegen_flags: <defaults>
</compile_context>

<pallas_src>
import functools

import jax
import jax.numpy as jnp
from jax import lax
from jax.experimental import pallas as pl
from jax.experimental.pallas import tpu as pltpu


def _make_rq_kernel(alpha_int):
    """Build the per-tile kernel.

    alpha_int: None  -> general alpha path: exp(log_amp - alpha*log(base)).
               int n -> fast path: amp * (1/base)**n (one EUP reciprocal,
                        n-1 VPU multiplies). Used when the caller statically
                        knows alpha is a small positive integer (default 1.0).
    """

    def kernel(params_ref, xsq_ref, zsq_ref, x_ref, zt_ref, o_ref):
        # params_ref : SMEM (4,) f32 = [inv_denom, neg_alpha, log_amp, amp]
        #              inv_denom = 1 / (2 * alpha * length_scale)
        # xsq_ref    : VMEM (tm, 1)  precomputed row norms of the X tile
        # zsq_ref    : VMEM (1, tn)  precomputed row norms of the Z tile (transposed)
        # x_ref      : VMEM (tm, D)  X row tile
        # zt_ref     : VMEM (D, tn)  Z^T column tile (lane-dense MXU RHS)
        # o_ref      : VMEM (tm, tn) output tile (tn multiple of 128)
        inv_denom = params_ref[0]

        x = x_ref[...]                                        # (tm, D)
        zt = zt_ref[...]                                      # (D, tn)
        cross = lax.dot_general(
            x, zt, (((1,), (0,)), ((), ())),
            preferred_element_type=jnp.float32)               # (tm, tn) on the MXU

        sqdist = xsq_ref[...] + zsq_ref[...] - 2.0 * cross
        # Guard against tiny negatives from fp cancellation when x ~ z.
        sqdist = jnp.maximum(sqdist, 0.0)
        base = 1.0 + sqdist * inv_denom                       # base >= 1

        if alpha_int is not None:
            amp = params_ref[3]
            inv = pl.reciprocal(base)                         # exact 1/base (EUP)
            p = inv
            for _ in range(alpha_int - 1):                    # static unroll, VPU
                p = p * inv
            o_ref[...] = amp * p
        else:
            neg_alpha = params_ref[1]
            log_amp = params_ref[2]
            # amplitude * base**(-alpha) == exp(log_amp - alpha*log(base))
            o_ref[...] = jnp.exp(log_amp + neg_alpha * jnp.log(base))

    return kernel


def _round_up(a, b):
    return ((a + b - 1) // b) * b


@functools.partial(jax.jit, static_argnames=("tm", "tn", "static_alpha"))
def rational_quadratic_forward(X, Z, log_amplitude, log_length_scale, log_alpha,
                               tm=512, tn=1024, static_alpha=None):
    """Pallas-backed equivalent of RationalQuadraticKernel.forward(X, Z).

    static_alpha: optional compile-time hint. If it is a small positive integer
    (the module default alpha=1.0 qualifies), the kernel replaces log+exp with
    a single reciprocal. The runtime log_alpha is still used for the
    denominator, so the hint must match the actual parameter value.
    """
    N, D = X.shape
    M, Dz = Z.shape
    assert D == Dz

    X = X.astype(jnp.float32)
    Z = Z.astype(jnp.float32)

    # Tile sizes: tn multiple of 128 (lane-dense, unmasked interior stores),
    # tm multiple of 8 (sublane alignment); clamped so tiny problems stay tiny.
    tm_eff = min(tm, _round_up(N, 8))
    tn_eff = min(tn, _round_up(M, 128))

    # v7x megacore: if the grid would be a single step, split the row axis so
    # both TensorCores get work (both grid axes are marked "parallel").
    if pl.cdiv(N, tm_eff) == 1 and pl.cdiv(M, tn_eff) == 1 and N > 8:
        tm_eff = min(tm_eff, max(8, _round_up(pl.cdiv(N, 2), 8)))

    grid = (pl.cdiv(N, tm_eff), pl.cdiv(M, tn_eff))

    # One-time wrapper prep (no per-step XLU reductions / relayouts in-kernel).
    Xsq = jnp.sum(X * X, axis=1, keepdims=True)          # (N, 1)
    Zsq = jnp.sum(Z * Z, axis=1, keepdims=True).T        # (1, M)
    ZT = Z.T                                             # (D, M) lane-dense MXU RHS

    alpha = jnp.exp(log_alpha)
    length_scale = jnp.exp(log_length_scale)
    inv_denom = 1.0 / (2.0 * alpha * length_scale)
    amp = jnp.exp(log_amplitude)
    params = jnp.stack([inv_denom, -alpha, log_amplitude, amp]).astype(jnp.float32)

    alpha_int = None
    if static_alpha is not None:
        sa = float(static_alpha)
        if sa == int(sa) and 1 <= int(sa) <= 8:
            alpha_int = int(sa)
    kernel = _make_rq_kernel(alpha_int)

    # Scoped VMEM: double-buffered tiles + headroom, capped well below the
    # 64 MiB physical VMEM of a v7x TensorCore.
    tile_bytes = 4 * (tm_eff * D + D * tn_eff + tm_eff + tn_eff + tm_eff * tn_eff)
    vmem_limit = int(min(48 * 1024 * 1024,
                         max(16 * 1024 * 1024, 2 * tile_bytes + (4 << 20))))

    return pl.pallas_call(
        kernel,
        out_shape=jax.ShapeDtypeStruct((N, M), jnp.float32),   # no pad, no slice
        grid_spec=pltpu.PrefetchScalarGridSpec(
            num_scalar_prefetch=0,
            grid=grid,
            in_specs=[
                pl.BlockSpec(memory_space=pltpu.MemorySpace.SMEM),  # params (4,)
                pl.BlockSpec((tm_eff, 1), lambda i, j: (i, 0)),     # Xsq row tile
                pl.BlockSpec((1, tn_eff), lambda i, j: (0, j)),     # Zsq col tile
                pl.BlockSpec((tm_eff, D), lambda i, j: (i, 0)),     # X row tile
                pl.BlockSpec((D, tn_eff), lambda i, j: (0, j)),     # Z^T col tile
            ],
            out_specs=pl.BlockSpec((tm_eff, tn_eff), lambda i, j: (i, j)),
        ),
        compiler_params=pltpu.CompilerParams(
            dimension_semantics=("parallel", "parallel"),
            vmem_limit_bytes=vmem_limit,
        ),
    )(params, Xsq, Zsq, X, ZT)


def _reference(X, Z, log_amplitude, log_length_scale, log_alpha):
    amp = jnp.exp(log_amplitude)
    ls = jnp.exp(log_length_scale)
    alpha = jnp.exp(log_alpha)
    Xsq = jnp.sum(X ** 2, axis=1, keepdims=True)
    Zsq = jnp.sum(Z ** 2, axis=1, keepdims=True)
    sqdist = Xsq + Zsq.T - 2.0 * X @ Z.T
    return amp * (1.0 + sqdist / (2.0 * alpha * ls)) ** (-alpha)


if __name__ == "__main__":
    # Module defaults: length_scale=1.0, alpha=1.0, amplitude_scale=1.0 -> log params = 0.
    log_amplitude = jnp.asarray(0.0, dtype=jnp.float32)
    log_length_scale = jnp.asarray(0.0, dtype=jnp.float32)
    log_alpha = jnp.asarray(0.0, dtype=jnp.float32)

    key = jax.random.PRNGKey(0)
    kx, kz, kx2, kz2 = jax.random.split(key, 4)

    # Small demo shapes.
    N, M, D = 64, 48, 16
    X = jax.random.normal(kx, (N, D), dtype=jnp.float32)
    Z = jax.random.normal(kz, (M, D), dtype=jnp.float32)
    K_ref = _reference(X, Z, log_amplitude, log_length_scale, log_alpha)

    # Fast path: alpha statically known to be 1 (the module default).
    K_fast = jax.block_until_ready(
        rational_quadratic_forward(X, Z, log_amplitude, log_length_scale, log_alpha,
                                   static_alpha=1.0))
    assert K_fast.shape == (N, M)
    assert jnp.allclose(K_fast, K_ref, atol=1e-5, rtol=1e-5), "fast-path mismatch"

    # General path: runtime alpha, log/exp in-kernel.
    K_gen = jax.block_until_ready(
        rational_quadratic_forward(X, Z, log_amplitude, log_length_scale, log_alpha))
    assert K_gen.shape == (N, M)
    assert jnp.allclose(K_gen, K_ref, atol=1e-5, rtol=1e-5), "general-path mismatch"

    # Non-divisible shapes: exercises masked boundary tiles (no padding / slicing).
    N2, M2, D2 = 200, 300, 16
    X2 = jax.random.normal(kx2, (N2, D2), dtype=jnp.float32)
    Z2 = jax.random.normal(kz2, (M2, D2), dtype=jnp.float32)
    K2 = jax.block_until_ready(
        rational_quadratic_forward(X2, Z2, log_amplitude, log_length_scale, log_alpha,
                                   static_alpha=1.0))
    K2_ref = _reference(X2, Z2, log_amplitude, log_length_scale, log_alpha)
    assert K2.shape == (N2, M2)
    assert jnp.allclose(K2, K2_ref, atol=1e-5, rtol=1e-5), "boundary-tile mismatch"

    print("KERNEL_OK")
</pallas_src>

<mosaic_0001>
module attributes {stable_mosaic.version = 11 : i64} {
  func.func @kernel(%arg0: i32, %arg1: i32, %arg2: memref<4xf32, #tpu.memory_space<smem>>, %arg3: memref<32x1xf32, #tpu.memory_space<vmem>>, %arg4: memref<1x128xf32, #tpu.memory_space<vmem>>, %arg5: memref<32x16xf32, #tpu.memory_space<vmem>>, %arg6: memref<16x128xf32, #tpu.memory_space<vmem>>, %arg7: memref<32x128xf32, #tpu.memory_space<vmem>>) attributes {dimension_semantics = [#tpu.dimension_semantics<parallel>, #tpu.dimension_semantics<parallel>], iteration_bounds = array<i64: 2, 1>, scalar_prefetch = 0 : i64, scratch_operands = 0 : i64, tpu.core_type = #tpu.core_type<tc>, window_params = [{transform_indices = @transform_0, window_bounds = array<i64: 4>}, {transform_indices = @transform_1, window_bounds = array<i64: 32, 1>}, {transform_indices = @transform_2, window_bounds = array<i64: 1, 128>}, {transform_indices = @transform_3, window_bounds = array<i64: 32, 16>}, {transform_indices = @transform_4, window_bounds = array<i64: 16, 128>}, {transform_indices = @transform_5, window_bounds = array<i64: 32, 128>}]} {
    %c0 = arith.constant 0 : index
    %0 = memref.load %arg2[%c0] : memref<4xf32, #tpu.memory_space<smem>>
    %c0_0 = arith.constant 0 : index
    %c0_1 = arith.constant 0 : index
    %1 = vector.load %arg5[%c0_0, %c0_1] : memref<32x16xf32, #tpu.memory_space<vmem>>, vector<32x16xf32>
    %c0_2 = arith.constant 0 : index
    %c0_3 = arith.constant 0 : index
    %2 = vector.load %arg6[%c0_2, %c0_3] : memref<16x128xf32, #tpu.memory_space<vmem>>, vector<16x128xf32>
    %cst = arith.constant dense<0.000000e+00> : vector<32x128xf32>
    %3 = tpu.matmul %1, %2, %cst {dimension_numbers = #tpu.dot_dimension_numbers<[1], [0], [0], [1], [0, 0, 1, 1], [], []>} : vector<32x16xf32>, vector<16x128xf32>, vector<32x128xf32> -> vector<32x128xf32>
    %c0_4 = arith.constant 0 : index
    %c0_5 = arith.constant 0 : index
    %4 = vector.load %arg3[%c0_4, %c0_5] : memref<32x1xf32, #tpu.memory_space<vmem>>, vector<32x1xf32>
    %c0_6 = arith.constant 0 : index
    %c0_7 = arith.constant 0 : index
    %5 = vector.load %arg4[%c0_6, %c0_7] : memref<1x128xf32, #tpu.memory_space<vmem>>, vector<1x128xf32>
    %6 = vector.broadcast %4 : vector<32x1xf32> to vector<32x128xf32>
    %7 = vector.broadcast %5 : vector<1x128xf32> to vector<32x128xf32>
    %8 = arith.addf %6, %7 : vector<32x128xf32>
    %cst_8 = arith.constant 2.000000e+00 : f32
    %9 = vector.broadcast %cst_8 : f32 to vector<32x128xf32>
    %10 = arith.mulf %9, %3 : vector<32x128xf32>
    %11 = arith.subf %8, %10 : vector<32x128xf32>
    %cst_9 = arith.constant 0.000000e+00 : f32
    %12 = vector.broadcast %cst_9 : f32 to vector<32x128xf32>
    %13 = arith.maximumf %11, %12 : vector<32x128xf32>
    %14 = vector.broadcast %0 : f32 to vector<32x128xf32>
    %15 = arith.mulf %13, %14 : vector<32x128xf32>
    %cst_10 = arith.constant 1.000000e+00 : f32
    %16 = vector.broadcast %cst_10 : f32 to vector<32x128xf32>
    %17 = arith.addf %16, %15 : vector<32x128xf32>
    %c3 = arith.constant 3 : index
    %18 = memref.load %arg2[%c3] : memref<4xf32, #tpu.memory_space<smem>>
    %19 = tpu.reciprocal %17 : vector<32x128xf32> -> vector<32x128xf32>
    %20 = vector.broadcast %18 : f32 to vector<32x128xf32>
    %21 = arith.mulf %20, %19 : vector<32x128xf32>
    %c0_11 = arith.constant 0 : index
    %c0_12 = arith.constant 0 : index
    %22 = vector.load %arg7[%c0_11, %c0_12] : memref<32x128xf32, #tpu.memory_space<vmem>>, vector<32x128xf32>
    tpu.vector_store %arg7[%c0_11, %c0_12], %21 {strides = array<i32>} : memref<32x128xf32, #tpu.memory_space<vmem>>, vector<32x128xf32>,
    return
  }
  func.func @transform_0(%arg0: i32, %arg1: i32) -> i32 {
    %c0_i32 = arith.constant 0 : i32
    %c0_i32_0 = arith.constant 0 : i32
    return %c0_i32 : i32
  }
  func.func @transform_1(%arg0: i32, %arg1: i32) -> (i32, i32) {
    %c0_i32 = arith.constant 0 : i32
    %c0_i32_0 = arith.constant 0 : i32
    return %arg0, %c0_i32 : i32, i32
  }
  func.func @transform_2(%arg0: i32, %arg1: i32) -> (i32, i32) {
    %c0_i32 = arith.constant 0 : i32
    %c0_i32_0 = arith.constant 0 : i32
    return %c0_i32, %arg1 : i32, i32
  }
  func.func @transform_3(%arg0: i32, %arg1: i32) -> (i32, i32) {
    %c0_i32 = arith.constant 0 : i32
    %c0_i32_0 = arith.constant 0 : i32
    return %arg0, %c0_i32 : i32, i32
  }
  func.func @transform_4(%arg0: i32, %arg1: i32) -> (i32, i32) {
    %c0_i32 = arith.constant 0 : i32
    %c0_i32_0 = arith.constant 0 : i32
    return %c0_i32, %arg1 : i32, i32
  }
  func.func @transform_5(%arg0: i32, %arg1: i32) -> (i32, i32) {
    %c0_i32 = arith.constant 0 : i32
    return %arg0, %arg1 : i32, i32
  }
}

</mosaic_0001>

<llo_original>
// kernel: rational_quadratic_forward.1
$region0: #{rational_quadratic_forward.1}
  #allocation0 [shape = 'u32[]', space=smem, size = 0x4, offset = 0x4, fixed_abs, tag = 'smem constant byte address 0x4 - core index']
  #allocation1 [shape = 'u32[144,128]{1,0:T(1,128)}', space=vmem, size = 0x12000, scoped, tag = 'internal scratch']
  %s0 = inlined_call_operand.vmem [shape: f32[4], index: 0, kind: input, shape index: {}]
  %s1 = inlined_call_operand.vmem [shape: f32[64,1], index: 1, kind: input, shape index: {}]
  %s2 = inlined_call_operand.vmem [shape: f32[1,48], index: 2, kind: input, shape index: {}]
  %s3 = inlined_call_operand.vmem [shape: f32[64,16], index: 3, kind: input, shape index: {}]
  %s4 = inlined_call_operand.vmem [shape: f32[16,48], index: 4, kind: input, shape index: {}]
  %s5 = inlined_call_operand.vmem [shape: f32[64,48], index: 5, kind: output, shape index: {}]
  %s6 = sld [smem:[#allocation0]]
  $region57: #{rational_quadratic_forward.1} parent=0
    _
  %s8 = ssub.s32 1, %s6
  %s9 = scalar_select 0, %s8, %s6
  $region1: #{rational_quadratic_forward.1} parent=0
    #allocation2 [shape = 'u8[512]{0}', space=smem, size = 0x200, scoped, tag = 'input window, operand 0, single buffered']
    #allocation3 [shape = 's32[2]{0}', space=sflag, size = 0x8, scoped, tag = 'scoped memory for rational_quadratic_forward.1']
    %10 = vsyncpa [#allocation3], 0
    loop: start=0, step=1, limit=4
    $region2: #{rational_quadratic_forward.1} parent=1 // loop_pre_header
      _
    $region3: #{rational_quadratic_forward.1} parent=1 // loop_header
      %s12 = sphi 0, %s16
      %p13 = scmp.ge.s32.totalorder %s12, 4
      %s19 = sphi 0, %s31
      %s20 = sphi 0, %s27
      %s21 = sphi 0, %s19
      %s22 = sphi 0, %s20
      %s23 = sphi 0, %s21
      %s24 = sphi 0, %s22
      %s32 = sphi 0, %s32
      %s34 = sphi 0, %s32
      %s35 = sphi 0, %s34
      %s49 = sphi 0, %s35
      %s55 = sphi 0, %s57
      %s58 = sphi 0, %s55
      %s59 = sphi 0, %s58
      %s75 = sphi 0, %s59
      %s81 = sphi 0, %s83
      %s84 = sphi 0, %s81
      %s85 = sphi 0, %s84
      %s101 = sphi 0, %s85
      %s107 = sphi 0, %s109
      %s110 = sphi 0, %s107
      %s111 = sphi 0, %s110
      %s127 = sphi 0, %s111
      %s133 = sphi 0, %s135
      %s136 = sphi 0, %s133
      %s137 = sphi 0, %s136
      %s153 = sphi 0, %s137
      %s161 = sphi 0, %s163
      %s164 = sphi 0, %s161
      %s165 = sphi 0, %s164
      %s181 = sphi 0, %s165
    $region4: #{rational_quadratic_forward.1} parent=1 // loop_header_branch
      %15 = sbr.rel (%p13) target = $region8
    $region5: #{rational_quadratic_forward.1} parent=1 // loop_body
      %s17 = ssub.s32 %s12, 1
      %s18 = ssub.s32 %s12, 2
      %s25 = sadd.s32 1, %s20
      %p26 = scmp.ge.s32.totalorder %s25, 1
      %s27 = scalar_select %p26, 0, %s25
      %s28 = sadd.s32 1, %s19
      %s29 = scalar_select %p26, %s28, %s19
      %p30 = scmp.ge.s32.totalorder %s29, 2
      %s31 = scalar_select %p30, 0, %s29
      %s33 = sadd.s32 %s32, 1
      %p36 = scmp.eq.s32.totalorder %s12, 1
      %p37 = scmp.ne.s32.totalorder %s32, %s34
      %p38 = scmp.eq.s32.totalorder %s12, 0
      %p39 = por %p37, %p38
      %p40 = scmp.ne.s32.totalorder %s32, %s34
      %p41 = scmp.eq.s32.totalorder %s17, 1
      %p42 = por %p40, %p41
      %p43 = scmp.ne.s32.totalorder %s34, %s35
      %p44 = scmp.eq.s32.totalorder %s17, 0
      %p45 = por %p43, %p44
      %p46 = scmp.ne.s32.totalorder %s34, %s35
      %p47 = scmp.eq.s32.totalorder %s18, 1
      %p48 = por %p46, %p47
      %p50 = scmp.ne.s32.totalorder %s35, %s49
      %p51 = scmp.eq.s32.totalorder %s18, 0
      %p52 = por %p50, %p51
      %s53 = ssub.s32 %s19, %s31
      %p54 = scmp.eq.s32.totalorder %s53, 0
      %s56 = sadd.s32 %s55, 1
      %s57 = scalar_select %p54, %s55, %s56
      %p60 = pneg %p54
      %p61 = scmp.eq.s32.totalorder %s12, 1
      %p62 = por %p60, %p61
      %p63 = scmp.ne.s32.totalorder %s55, %s58
      %p64 = scmp.eq.s32.totalorder %s12, 0
      %p65 = por %p63, %p64
      %p66 = scmp.ne.s32.totalorder %s55, %s58
      %p67 = scmp.eq.s32.totalorder %s17, 1
      %p68 = por %p66, %p67
      %p69 = scmp.ne.s32.totalorder %s58, %s59
      %p70 = scmp.eq.s32.totalorder %s17, 0
      %p71 = por %p69, %p70
      %p72 = scmp.ne.s32.totalorder %s58, %s59
      %p73 = scmp.eq.s32.totalorder %s18, 1
      %p74 = por %p72, %p73
      %p76 = scmp.ne.s32.totalorder %s59, %s75
      %p77 = scmp.eq.s32.totalorder %s18, 0
      %p78 = por %p76, %p77
      %s79 = ssub.s32 %s20, %s27
      %p80 = scmp.eq.s32.totalorder %s79, 0
      %s82 = sadd.s32 %s81, 1
      %s83 = scalar_select %p80, %s81, %s82
      %p86 = pneg %p80
      %p87 = scmp.eq.s32.totalorder %s12, 1
      %p88 = por %p86, %p87
      %p89 = scmp.ne.s32.totalorder %s81, %s84
      %p90 = scmp.eq.s32.totalorder %s12, 0
      %p91 = por %p89, %p90
      %p92 = scmp.ne.s32.totalorder %s81, %s84
      %p93 = scmp.eq.s32.totalorder %s17, 1
      %p94 = por %p92, %p93
      %p95 = scmp.ne.s32.totalorder %s84, %s85
      %p96 = scmp.eq.s32.totalorder %s17, 0
      %p97 = por %p95, %p96
      %p98 = scmp.ne.s32.totalorder %s84, %s85
      %p99 = scmp.eq.s32.totalorder %s18, 1
      %p100 = por %p98, %p99
      %p102 = scmp.ne.s32.totalorder %s85, %s101
      %p103 = scmp.eq.s32.totalorder %s18, 0
      %p104 = por %p102, %p103
      %s105 = ssub.s32 %s19, %s31
      %p106 = scmp.eq.s32.totalorder %s105, 0
      %s108 = sadd.s32 %s107, 1
      %s109 = scalar_select %p106, %s107, %s108
      %p112 = pneg %p106
      %p113 = scmp.eq.s32.totalorder %s12, 1
      %p114 = por %p112, %p113
      %p115 = scmp.ne.s32.totalorder %s107, %s110
      %p116 = scmp.eq.s32.totalorder %s12, 0
      %p117 = por %p115, %p116
      %p118 = scmp.ne.s32.totalorder %s107, %s110
      %p119 = scmp.eq.s32.totalorder %s17, 1
      %p120 = por %p118, %p119
      %p121 = scmp.ne.s32.totalorder %s110, %s111
      %p122 = scmp.eq.s32.totalorder %s17, 0
      %p123 = por %p121, %p122
      %p124 = scmp.ne.s32.totalorder %s110, %s111
      %p125 = scmp.eq.s32.totalorder %s18, 1
      %p126 = por %p124, %p125
      %p128 = scmp.ne.s32.totalorder %s111, %s127
      %p129 = scmp.eq.s32.totalorder %s18, 0
      %p130 = por %p128, %p129
      %s131 = ssub.s32 %s20, %s27
      %p132 = scmp.eq.s32.totalorder %s131, 0
      %s134 = sadd.s32 %s133, 1
      %s135 = scalar_select %p132, %s133, %s134
      %p138 = pneg %p132
      %p139 = scmp.eq.s32.totalorder %s12, 1
      %p140 = por %p138, %p139
      %p141 = scmp.ne.s32.totalorder %s133, %s136
      %p142 = scmp.eq.s32.totalorder %s12, 0
      %p143 = por %p141, %p142
      %p144 = scmp.ne.s32.totalorder %s133, %s136
      %p145 = scmp.eq.s32.totalorder %s17, 1
      %p146 = por %p144, %p145
      %p147 = scmp.ne.s32.totalorder %s136, %s137
      %p148 = scmp.eq.s32.totalorder %s17, 0
      %p149 = por %p147, %p148
      %p150 = scmp.ne.s32.totalorder %s136, %s137
      %p151 = scmp.eq.s32.totalorder %s18, 1
      %p152 = por %p150, %p151
      %p154 = scmp.ne.s32.totalorder %s137, %s153
      %p155 = scmp.eq.s32.totalorder %s18, 0
      %p156 = por %p154, %p155
      %s157 = ssub.s32 %s19, %s31
      %s158 = ssub.s32 %s20, %s27
      %s159 = sor.u32 %s157, %s158
      %p160 = scmp.eq.s32.totalorder %s159, 0
      %s162 = sadd.s32 %s161, 1
      %s163 = scalar_select %p160, %s161, %s162
      %p166 = pneg %p160
      %p167 = scmp.eq.s32.totalorder %s12, 1
      %p168 = por %p166, %p167
      %p169 = scmp.ne.s32.totalorder %s161, %s164
      %p170 = scmp.eq.s32.totalorder %s12, 0
      %p171 = por %p169, %p170
      %p172 = scmp.ne.s32.totalorder %s161, %s164
      %p173 = scmp.eq.s32.totalorder %s17, 1
      %p174 = por %p172, %p173
      %p175 = scmp.ne.s32.totalorder %s164, %s165
      %p176 = scmp.eq.s32.totalorder %s17, 0
      %p177 = por %p175, %p176
      %p178 = scmp.ne.s32.totalorder %s164, %s165
      %p179 = scmp.eq.s32.totalorder %s18, 1
      %p180 = por %p178, %p179
      %p182 = scmp.ne.s32.totalorder %s165, %s181
      %p183 = scmp.eq.s32.totalorder %s18, 0
      %p184 = por %p182, %p183
      %p185 = scmp.le.s32.totalorder 1, %s12
      %p186 = scmp.lt.s32.totalorder %s12, 3
      %p187 = pnand %p185, %p186
      %p188 = pneg %p187
      // Predicated region
      $region9: #{rational_quadratic_forward.1} parent=5 // pred_check
        _
      $region10: #{rational_quadratic_forward.1} parent=5 // pred_check_branch
        %190 = sbr.rel (%p187) target = $region12
      $region11: #{rational_quadratic_forward.1} parent=5 // pred_region
        %s191 = ssub.s32 %s12, 1
        // Predicated region
        $region13: #{rational_quadratic_forward.1} parent=11 // pred_check
          %p192 = pneg %p45
        $region14: #{rational_quadratic_forward.1} parent=11 // pred_check_branch
          %194 = sbr.rel (%p192) target = $region16
        $region15: #{rational_quadratic_forward.1} parent=11 // pred_region
          %s196 = ssub.s32 16, 16
          %197 = vsyncadd [#allocation3], %s196
          %s199 = sshll.u32 %s0, 4
          %s200 = int_to_ptr.vmem [resolvable:$true] %s199
          %202 = dma.vmem_to_smem %s200, 16, [#allocation2], [#allocation3]
        $region16: #{rational_quadratic_forward.1} parent=11 // pred_fallthru
          _
        // Predicated region
        $region17: #{rational_quadratic_forward.1} parent=11 // pred_check
          %p203 = pneg %p97
        $region18: #{rational_quadratic_forward.1} parent=11 // pred_check_branch
          %205 = sbr.rel (%p203) target = $region20
        $region19: #{rational_quadratic_forward.1} parent=11 // pred_region
          %p206 = scmp.lt.s32.totalorder %s22, 0
          %s207 = scalar_select %p206, %s22, 0
          %s208 = scalar_lea.vmem %s2, %s207
        $region20: #{rational_quadratic_forward.1} parent=11 // pred_fallthru
          _
        // Predicated region
        $region21: #{rational_quadratic_forward.1} parent=11 // pred_check
          %p209 = pneg %p149
        $region22: #{rational_quadratic_forward.1} parent=11 // pred_check_branch
          %211 = sbr.rel (%p209) target = $region24
        $region23: #{rational_quadratic_forward.1} parent=11 // pred_region
          %p212 = scmp.lt.s32.totalorder %s22, 0
          %s213 = scalar_select %p212, %s22, 0
          %s214 = smul.addr %s213, 8
          %s215 = scalar_lea.vmem %s4, %s214
        $region24: #{rational_quadratic_forward.1} parent=11 // pred_fallthru
          _
      $region12: #{rational_quadratic_forward.1} parent=5 // pred_fallthru
        _
      %p216 = scmp.lt.s32.totalorder %s12, 2
      // Predicated region
      $region25: #{rational_quadratic_forward.1} parent=5 // pred_check
        %p217 = pneg %p216
      $region26: #{rational_quadratic_forward.1} parent=5 // pred_check_branch
        %219 = sbr.rel (%p217) target = $region28
      $region27: #{rational_quadratic_forward.1} parent=5 // pred_region
        // Predicated region
        $region29: #{rational_quadratic_forward.1} parent=27 // pred_check
          %p220 = pneg %p65
        $region30: #{rational_quadratic_forward.1} parent=27 // pred_check_branch
          %222 = sbr.rel (%p220) target = $region32
        $region31: #{rational_quadratic_forward.1} parent=27 // pred_region
          %s223 = smul.u32 4, %s19
          %p224 = scmp.lt.s32.totalorder %s223, 7
          %s225 = scalar_select %p224, %s223, 7
          %s226 = smul.addr %s225, 8
          %s227 = scalar_lea.vmem %s1, %s226
          %s228 = smul.u32 4, %s19
        $region32: #{rational_quadratic_forward.1} parent=27 // pred_fallthru
          _
        // Predicated region
        $region33: #{rational_quadratic_forward.1} parent=27 // pred_check
          %p229 = pneg %p117
        $region34: #{rational_quadratic_forward.1} parent=27 // pred_check_branch
          %231 = sbr.rel (%p229) target = $region36
        $region35: #{rational_quadratic_forward.1} parent=27 // pred_region
          %s232 = smul.u32 4, %s19
          %p233 = scmp.lt.s32.totalorder %s232, 7
          %s234 = scalar_select %p233, %s232, 7
          %s235 = smul.addr %s234, 8
          %s236 = scalar_lea.vmem %s3, %s235
          %s237 = smul.u32 4, %s19
        $region36: #{rational_quadratic_forward.1} parent=27 // pred_fallthru
          _
      $region28: #{rational_quadratic_forward.1} parent=5 // pred_fallthru
        _
      %p238 = scmp.le.s32.totalorder 1, %s12
      %p239 = scmp.lt.s32.totalorder %s12, 3
      %p240 = pnand %p238, %p239
      %p241 = pneg %p240
      // Predicated region
      $region37: #{rational_quadratic_forward.1} parent=5 // pred_check
        _
      $region38: #{rational_quadratic_forward.1} parent=5 // pred_check_branch
        %243 = sbr.rel (%p240) target = $region40
      $region39: #{rational_quadratic_forward.1} parent=5 // pred_region
        %s244 = ssub.s32 %s12, 1
        // Predicated region
        $region41: #{rational_quadratic_forward.1} parent=39 // pred_check
          %p245 = pneg %p45
        $region42: #{rational_quadratic_forward.1} parent=39 // pred_check_branch
          %247 = sbr.rel (%p245) target = $region44
        $region43: #{rational_quadratic_forward.1} parent=39 // pred_region
          %248 = dma.done [#allocation3], 16
        $region44: #{rational_quadratic_forward.1} parent=39 // pred_fallthru
          _
        %249 = sfence
        %p250 = pneg %p45
        %p251 = pneg %p42
        %s252 = smul.u32 4, %s21
        %p253 = scmp.lt.s32.totalorder %s252, 7
        %s254 = scalar_select %p253, %s252, 7
        %s255 = smul.addr %s254, 8
        %s256 = scalar_lea.vmem %s1, %s255
        %p257 = pneg %p71
        %p258 = pneg %p68
        %p259 = scmp.lt.s32.totalorder %s22, 0
        %s260 = scalar_select %p259, %s22, 0
        %s261 = scalar_lea.vmem %s2, %s260
        %p262 = pneg %p97
        %p263 = pneg %p94
        %s264 = smul.u32 4, %s21
        %p265 = scmp.lt.s32.totalorder %s264, 7
        %s266 = scalar_select %p265, %s264, 7
        %s267 = smul.addr %s266, 8
        %s268 = scalar_lea.vmem %s3, %s267
        %p269 = pneg %p123
        %p270 = pneg %p120
        %p271 = scmp.lt.s32.totalorder %s22, 0
        %s272 = scalar_select %p271, %s22, 0
        %s273 = smul.addr %s272, 8
        %s274 = scalar_lea.vmem %s4, %s273
        %p275 = pneg %p149
        %p276 = pneg %p146
        %p277 = pneg %p177
        %p278 = pneg %p174
        %s279 = smul.u32 4, %s21
        %p280 = scmp.lt.s32.totalorder %s279, 7
        %s281 = scalar_select %p280, %s279, 7
        %p282 = scmp.lt.s32.totalorder %s22, 0
        %s283 = scalar_select %p282, %s22, 0
        %s284 = sadd.s32 %s283, %s281
        %s285 = smul.addr %s284, 8
        %s286 = scalar_lea.vmem %s5, %s285
        %s287 = smul.u32 4, %s21
        %p288 = scmp.lt.s32.totalorder %s287, 7
        %s289 = scalar_select %p288, %s287, 7
        %s290 = smul.addr %s289, 8
        %s291 = scalar_lea.vmem %s1, %s290
        %s292 = smul.u32 4, %s21
        %p293 = scmp.lt.s32.totalorder %s22, 0
        %s294 = scalar_select %p293, %s22, 0
        %s295 = scalar_lea.vmem %s2, %s294
        %s296 = smul.u32 4, %s21
        %p297 = scmp.lt.s32.totalorder %s296, 7
        %s298 = scalar_select %p297, %s296, 7
        %s299 = smul.addr %s298, 8
        %s300 = scalar_lea.vmem %s3, %s299
        %s301 = smul.u32 4, %s21
        %p302 = scmp.lt.s32.totalorder %s22, 0
        %s303 = scalar_select %p302, %s22, 0
        %s304 = smul.addr %s303, 8
        %s305 = scalar_lea.vmem %s4, %s304
        %s306 = smul.u32 4, %s21
        %p307 = scmp.lt.s32.totalorder %s306, 7
        %s308 = scalar_select %p307, %s306, 7
        %p309 = scmp.lt.s32.totalorder %s22, 0
        %s310 = scalar_select %p309, %s22, 0
        %s311 = sadd.s32 %s310, %s308
        %s312 = smul.addr %s311, 8
        %s313 = scalar_lea.vmem %s5, %s312
        %s314 = smul.u32 4, %s21
        %s315 = sld [smem:[#allocation2]]
        %v316 = vld [vmem:[%s300] sm:$0xff]
        %v317 = vld [vmem:[%s300 + $0x8] sm:$0xff]
        %v318 = vld [vmem:[%s300 + $0x10] sm:$0xff]
        %v319 = vld [vmem:[%s300 + $0x18] sm:$0xff]
        %v320 = vld [vmem:[%s305] sm:$0xff]
        %v321 = vld [vmem:[%s305 + $0x8] sm:$0xff]
        %vm322 = vcmask 130048
        %v324 = vsel %vm322, %v316, 0
        %v327 = vsel %vm322, %v317, 0
        %v330 = vsel %vm322, %v318, 0
        %v333 = vsel %vm322, %v319, 0
        %335 = vmatprep.subr.mxu0 0.0
        %336 = vmatpush1.msra.mxu0 %v320
        %337 = vmatprep.subr.mxu0 0.0
        %338 = vmatpush1.msra.mxu0 %v321
        %339 = vmatprep.subr.mxu0 0.0
        %340 = vmatpush1.msra.mxu0 0.0
        %341 = vmatprep.subr.mxu0 0.0
        %342 = vmatpush1.msra.mxu0 0.0
        %343 = vmatprep.subr.mxu0 0.0
        %344 = vmatpush1.msra.mxu0 0.0
        %345 = vmatprep.subr.mxu0 0.0
        %346 = vmatpush1.msra.mxu0 0.0
        %347 = vmatprep.subr.mxu0 0.0
        %348 = vmatpush1.msra.mxu0 0.0
        %349 = vmatprep.subr.mxu0 0.0
        %350 = vmatpush1.msra.mxu0 0.0
        %351 = vmatprep.subr.mxu0 0.0
        %352 = vmatpush1.msra.mxu0 0.0
        %353 = vmatprep.subr.mxu0 0.0
        %354 = vmatpush1.msra.mxu0 0.0
        %355 = vmatprep.subr.mxu0 0.0
        %356 = vmatpush1.msra.mxu0 0.0
        %357 = vmatprep.subr.mxu0 0.0
        %358 = vmatpush1.msra.mxu0 0.0
        %359 = vmatprep.subr.mxu0 0.0
        %360 = vmatpush1.msra.mxu0 0.0
        %361 = vmatprep.subr.mxu0 0.0
        %362 = vmatpush1.msra.mxu0 0.0
        %363 = vmatprep.subr.mxu0 0.0
        %364 = vmatpush1.msra.mxu0 0.0
        %365 = vmatprep.subr.mxu0 0.0
        %366 = vmatpush1.msra.mxu0 0.0
        %367 = vmatprep.subr.mxu0 0.0
        %368 = vmatpush1.msra.mxu0 0.0
        %369 = vmatprep.subr.mxu0 0.0
        %370 = vmatpush1.msra.mxu0 0.0
        %371 = vmatprep.subr.mxu0 0.0
        %372 = vmatpush1.msra.mxu0 0.0
        %373 = vmatprep.subr.mxu0 0.0
        %374 = vmatpush1.msra.mxu0 0.0
        %375 = vmatprep.subr.mxu0 0.0
        %376 = vmatpush1.msra.mxu0 0.0
        %377 = vmatprep.subr.mxu0 0.0
        %378 = vmatpush1.msra.mxu0 0.0
        %379 = vmatprep.subr.mxu0 0.0
        %380 = vmatpush1.msra.mxu0 0.0
        %381 = vmatprep.subr.mxu0 0.0
        %382 = vmatpush1.msra.mxu0 0.0
        %383 = vmatprep.subr.mxu0 0.0
        %384 = vmatpush1.msra.mxu0 0.0
        %385 = vmatprep.subr.mxu0 0.0
        %386 = vmatpush1.msra.mxu0 0.0
        %387 = vmatprep.subr.mxu0 0.0
        %388 = vmatpush1.msra.mxu0 0.0
        %389 = vmatprep.subr.mxu0 0.0
        %390 = vmatpush1.msra.mxu0 0.0
        %391 = vmatprep.subr.mxu0 0.0
        %392 = vmatpush1.msra.mxu0 0.0
        %393 = vmatprep.subr.mxu0 0.0
        %394 = vmatpush1.msra.mxu0 0.0
        %395 = vmatprep.subr.mxu0 0.0
        %396 = vmatpush1.msra.mxu0 0.0
        %397 = vmatprep.subr.mxu0 0.0
        %398 = vmatpush1.msra.mxu0 0.0
        %399 = vmatprep.mubr.f32.mxu0 0.0
        %400 = vmatmul.mubr.f32.gmra.mrb[0].mxu0 %v324
        %v401 = vpop.f32.mrb[0].mxu0
        %v402 = vadd.f32 0.0, %v401
        %v403 = vpop.f32.mrb[0].mxu0
        %404 = vmatprep.mubr.f32.mxu0 0.0
        %405 = vmatmul.mubr.f32.gmra.mrb[0].mxu0 %v327
        %v406 = vpop.f32.mrb[0].mxu0
        %v407 = vadd.f32 0.0, %v406
        %v408 = vpop.f32.mrb[0].mxu0
        %409 = vmatprep.mubr.f32.mxu0 0.0
        %410 = vmatmul.mubr.f32.gmra.mrb[0].mxu0 %v330
        %v411 = vpop.f32.mrb[0].mxu0
        %v412 = vadd.f32 0.0, %v411
        %v413 = vpop.f32.mrb[0].mxu0
        %414 = vmatprep.mubr.f32.mxu0 0.0
        %415 = vmatmul.mubr.f32.gmra.mrb[0].mxu0 %v333
        %v416 = vpop.f32.mrb[0].mxu0
        %v417 = vadd.f32 0.0, %v416
        %v418 = vpop.f32.mrb[0].mxu0
        %419 = vdwg.mxu0
        %v420 = vld [vmem:[%s291] sm:$0xff]
        %v421 = vld [vmem:[%s291 + $0x8] sm:$0xff]
        %v422 = vld [vmem:[%s291 + $0x10] sm:$0xff]
        %v423 = vld [vmem:[%s291 + $0x18] sm:$0xff]
        %v424 = vld [vmem:[%s295] sm:$0x1]
        %426 = vset.pattern.permute.xlu0 0
        %427 = vperm.xlu0 %426, %v420
        %v428 = vpop.permute.xlu0 %427
        %431 = vset.pattern.permute.xlu0 0
        %432 = vperm.xlu0 %431, %v421
        %v433 = vpop.permute.xlu0 %432
        %436 = vset.pattern.permute.xlu0 0
        %437 = vperm.xlu0 %436, %v422
        %v438 = vpop.permute.xlu0 %437
        %441 = vset.pattern.permute.xlu0 0
        %442 = vperm.xlu0 %441, %v423
        %v443 = vpop.permute.xlu0 %442
        %v446 = vlaneseq
        %v447 = vshrl.u32 %v446, 7
        %v448 = vsub.s32 0, %v447
        %v449 = vrot.slane %v424, %v448
        %v451 = vadd.f32 %v428, %v449
        %v452 = vadd.f32 %v433, %v449
        %v453 = vadd.f32 %v438, %v449
        %v454 = vadd.f32 %v443, %v449
        %v455 = vmul.f32 %v402, 2.0
        %v456 = vmul.f32 %v407, 2.0
        %v457 = vmul.f32 %v412, 2.0
        %v458 = vmul.f32 %v417, 2.0
        %v459 = vsub.f32 %v451, %v455
        %v460 = vsub.f32 %v452, %v456
        %v461 = vsub.f32 %v453, %v457
        %v462 = vsub.f32 %v454, %v458
        %v463 = vmax.f32 %v459, 0.0
        %v464 = vmax.f32 %v460, 0.0
        %v465 = vmax.f32 %v461, 0.0
        %v466 = vmax.f32 %v462, 0.0
        %v467 = vstv %s315
        %v468 = vmul.f32 %v463, %v467
        %v469 = vmul.f32 %v464, %v467
        %v470 = vmul.f32 %v465, %v467
        %v471 = vmul.f32 %v466, %v467
        %v472 = vadd.f32 %v468, 1.0
        %v473 = vadd.f32 %v469, 1.0
        %v474 = vadd.f32 %v470, 1.0
        %v475 = vadd.f32 %v471, 1.0
        %s476 = sld [smem:[#allocation2 + $0x3]]
        %v477 = vrcp.pop %v472
        %v478 = vrcp.pop %v473
        %v479 = vrcp.pop %v474
        %v480 = vrcp.pop %v475
        %v481 = vstv %s476
        %v482 = vmul.f32 %v481, %v477
        %v483 = vmul.f32 %v481, %v478
        %v484 = vmul.f32 %v481, %v479
        %v485 = vmul.f32 %v481, %v480
        %486 = vst [vmem:[%s313] sm:$0xff] %v482
        %487 = vst [vmem:[%s313 + $0x8] sm:$0xff] %v483
        %488 = vst [vmem:[%s313 + $0x10] sm:$0xff] %v484
        %489 = vst [vmem:[%s313 + $0x18] sm:$0xff] %v485
        %s490 = smul.u32 4, %s21
        %p491 = scmp.lt.s32.totalorder %s490, 7
        %s492 = scalar_select %p491, %s490, 7
        %p493 = scmp.lt.s32.totalorder %s22, 0
        %s494 = scalar_select %p493, %s22, 0
        %s495 = sadd.s32 %s494, %s492
        %s496 = smul.addr %s495, 8
        %s497 = scalar_lea.vmem %s5, %s496
        // Predicated region
        $region45: #{rational_quadratic_forward.1} parent=39 // pred_check
          %p498 = pneg %p174
        $region46: #{rational_quadratic_forward.1} parent=39 // pred_check_branch
          %500 = sbr.rel (%p498) target = $region48
        $region47: #{rational_quadratic_forward.1} parent=39 // pred_region
          %s501 = smul.u32 4, %s21
        $region48: #{rational_quadratic_forward.1} parent=39 // pred_fallthru
          _
      $region40: #{rational_quadratic_forward.1} parent=5 // pred_fallthru
        _
      %p502 = scmp.le.s32.totalorder 2, %s12
      // Predicated region
      $region49: #{rational_quadratic_forward.1} parent=5 // pred_check
        %p503 = pneg %p502
      $region50: #{rational_quadratic_forward.1} parent=5 // pred_check_branch
        %505 = sbr.rel (%p503) target = $region52
      $region51: #{rational_quadratic_forward.1} parent=5 // pred_region
        %s506 = ssub.s32 %s12, 2
        // Predicated region
        $region53: #{rational_quadratic_forward.1} parent=51 // pred_check
          %p507 = pneg %p180
        $region54: #{rational_quadratic_forward.1} parent=51 // pred_check_branch
          %509 = sbr.rel (%p507) target = $region56
        $region55: #{rational_quadratic_forward.1} parent=51 // pred_region
          %s510 = smul.u32 4, %s23
          %p511 = scmp.lt.s32.totalorder %s510, 7
          %s512 = scalar_select %p511, %s510, 7
          %p513 = scmp.lt.s32.totalorder %s24, 0
          %s514 = scalar_select %p513, %s24, 0
          %s515 = sadd.s32 %s514, %s512
          %s516 = smul.addr %s515, 8
          %s517 = scalar_lea.vmem %s5, %s516
        $region56: #{rational_quadratic_forward.1} parent=51 // pred_fallthru
          _
      $region52: #{rational_quadratic_forward.1} parent=5 // pred_fallthru
        _
    $region6: #{rational_quadratic_forward.1} parent=1 // loop_footer
      %s16 = sadd.s32 1, %s12
    $region7: #{rational_quadratic_forward.1} parent=1 // loop_footer_branch
      %11 = sbr.rel target = $region3
    $region8: #{rational_quadratic_forward.1} parent=1 // loop_exit
      _
    %518 = vsyncpa [#allocation3], 1
    %s519 = scalar_lea.sflag [#allocation3], 1
    %520 = vsyncpa %s519, 1

</llo_original>
